<compile_context>
chip_gen: v7x
topology: tpu7x:2x2x1
jax: 0.10.0
libtpu: 0.0.40
codegen_flags: <defaults>
</compile_context>

<pallas_src>
import jax
import jax.numpy as jnp
from jax.experimental import pallas as pl
from jax.experimental.pallas import tpu as pltpu


# ----------------------------------------------------------------------------
# Model configuration (matches MaskEstimator.__init__ for grid_size=(16, 16))
# ----------------------------------------------------------------------------
GRID_SIZE = (16, 16)
FLAT_DIM = GRID_SIZE[0] * GRID_SIZE[1]          # 256
HALF_DIM = FLAT_DIM // 2                        # 128
PAD = 128                                       # lane padding for narrow dims

# Original (unpadded) layer shapes: (fan_in, fan_out, relu_after).
GRID_LAYERS = [
    (FLAT_DIM, HALF_DIM, True),
    (HALF_DIM, HALF_DIM, True),
    (HALF_DIM, HALF_DIM, True),
    (HALF_DIM, HALF_DIM, True),
    (HALF_DIM, HALF_DIM, True),
    (HALF_DIM, 24, False),
]
ITEM_LAYERS = [
    (3, 24, True),
    (24, 24, True),
    (24, 24, True),
    (24, 24, True),
    (24, 24, True),
    (24, 24, False),
]
OUT_LAYERS = [
    (48, 48, True),
    (48, 96, True),
    (96, FLAT_DIM, False),
]

# In-kernel precision: bf16 operands, f32 accumulation (perf review).
WEIGHT_DTYPE = jnp.bfloat16
COMPUTE_DTYPE = jnp.bfloat16

# Compact slab layout.
#   w0     : (256, 128)      grid layer 0
#   w_mid  : (7, 128, 128)   slots 0..4 = grid layers 1..5
#                            slot  5    = W_g  (rows 0:24 of output-head W0)
#                            slot  6    = output-head layer 1 (48 -> 96)
#   w_last : (128, 256)      output-head layer 2 (96 -> 256), rows padded
#   b_slab : (9, 1, 256) f32 rows 0..5 grid biases, 6/7/8 head biases
N_MID_SLOTS = 7
N_BIAS_ROWS = 9


# ----------------------------------------------------------------------------
# Pallas kernel: grid branch + output head, weights resident across tiles.
# ----------------------------------------------------------------------------
def mask_estimator_kernel(grid_ref, itemc_ref, w0_ref, wmid_ref, wlast_ref,
                          b_ref, out_ref):
    cd = COMPUTE_DTYPE

    def bias(i, n):
        return b_ref[i, :, :n]                               # (1, n) f32

    # --- grid branch, layer 0: (TB,256) @ (256,128) ---
    h = jnp.dot(grid_ref[...].astype(cd), w0_ref[...],
                preferred_element_type=jnp.float32) + bias(0, 128)
    h = jnp.maximum(h, 0.0)

    # --- grid branch, layers 1..5 (slots 0..4); ReLU after 1..4 only ---
    for l in range(5):
        h = jnp.dot(h.astype(cd), wmid_ref[l],
                    preferred_element_type=jnp.float32) + bias(1 + l, 128)
        if l < 4:
            h = jnp.maximum(h, 0.0)
    out_grid = h                                             # (TB,128); cols 24.. are 0

    # --- output head layer 0: concat replaced by split-weight accumulate.
    #     out_item @ W0[24:48] was precomputed host-side (itemc, f32, padded). ---
    h = (jnp.dot(out_grid.astype(cd), wmid_ref[5],
                 preferred_element_type=jnp.float32)
         + itemc_ref[...] + bias(6, 128))
    h = jnp.maximum(h, 0.0)                                  # (TB,128); cols 48.. are 0

    # --- output head layer 1: (48 -> 96), padded to 128x128 ---
    h = jnp.dot(h.astype(cd), wmid_ref[6],
                preferred_element_type=jnp.float32) + bias(7, 128)
    h = jnp.maximum(h, 0.0)                                  # cols 96.. are 0

    # --- output head layer 2: (96 -> 256), rows padded to 128 ---
    h = jnp.dot(h.astype(cd), wlast_ref[...],
                preferred_element_type=jnp.float32) + bias(8, 256)
    out_ref[...] = h


# ----------------------------------------------------------------------------
# Parameter init (deterministic, PyTorch-Linear-style uniform(+-1/sqrt(fan_in)))
# ----------------------------------------------------------------------------
def init_params(key):
    params = []  # flat list [W0, b0, W1, b1, ...]: grid(6) + item(6) + out(3)
    for (fan_in, fan_out, _) in GRID_LAYERS + ITEM_LAYERS + OUT_LAYERS:
        key, kw, kb = jax.random.split(key, 3)
        bound = 1.0 / jnp.sqrt(jnp.float32(fan_in))
        w = jax.random.uniform(kw, (fan_in, fan_out), jnp.float32, -bound, bound)
        b = jax.random.uniform(kb, (1, fan_out), jnp.float32, -bound, bound)
        params.append(w)
        params.append(b)
    return params


def pack_params(params):
    """Compact slab packing (review item 1): only the shapes the kernel needs."""
    wd = WEIGHT_DTYPE
    w0 = params[0].astype(wd)                                 # (256, 128)
    w_mid = jnp.zeros((N_MID_SLOTS, 128, 128), wd)
    w_last = jnp.zeros((128, 256), wd)
    b_slab = jnp.zeros((N_BIAS_ROWS, 1, 256), jnp.float32)

    b_slab = b_slab.at[0, 0, :128].set(params[1].reshape(-1))
    for l in range(1, 6):                                     # grid layers 1..5
        w, b = params[2 * l], params[2 * l + 1]
        w_mid = w_mid.at[l - 1, : w.shape[0], : w.shape[1]].set(w.astype(wd))
        b_slab = b_slab.at[l, 0, : b.shape[-1]].set(b.reshape(-1))

    w_o0, b_o0 = params[24], params[25]                       # (48,48), (1,48)
    w_o1, b_o1 = params[26], params[27]                       # (48,96), (1,96)
    w_o2, b_o2 = params[28], params[29]                       # (96,256), (1,256)
    w_mid = w_mid.at[5, :24, :48].set(w_o0[:24].astype(wd))   # W_g (grid half)
    b_slab = b_slab.at[6, 0, :48].set(b_o0.reshape(-1))
    w_mid = w_mid.at[6, :48, :96].set(w_o1.astype(wd))
    b_slab = b_slab.at[7, 0, :96].set(b_o1.reshape(-1))
    w_last = w_last.at[:96, :].set(w_o2.astype(wd))
    b_slab = b_slab.at[8, 0, :256].set(b_o2.reshape(-1))
    return w0, w_mid, w_last, b_slab


def _item_head_contrib(item_flat, params):
    """layers_item (tiny, f32, plain XLA — hoisted out of the kernel per perf
    review) followed by its half of the first output-head weight."""
    h = item_flat.astype(jnp.float32)
    for l in range(6):
        w, b = params[12 + 2 * l], params[12 + 2 * l + 1]
        h = h @ w + b
        if l < 5:
            h = jnp.maximum(h, 0.0)
    return h @ params[24][24:, :]                             # (B, 48)


# ----------------------------------------------------------------------------
# Wrapper
# ----------------------------------------------------------------------------
def _round_up(x, m):
    return ((x + m - 1) // m) * m


def _choose_tb(b):
    """Batch tile: multiple of 16 (bf16 sublane packing); >=2 tiles when
    B > 128 so v7x's second TensorCore gets work; capped at 512 rows."""
    if b <= 128:
        return max(16, _round_up(b, 16))
    n_tiles = max(2, 2 * -(-b // 1024))        # even tile count, tiles <= ~512
    return min(512, _round_up(-(-b // n_tiles), 16))


@jax.jit
def mask_estimator_forward(grid, item, params, packed):
    """grid: (B, H, W) f32; item: (B, 1, 3) f32 -> (B, H, W) logits (f32)."""
    w0, w_mid, w_last, b_slab = packed
    H, W = GRID_SIZE
    grid_flat = grid.reshape(-1, H * W).astype(COMPUTE_DTYPE)     # (B, 256) bf16
    b = grid_flat.shape[0]

    # Item branch + its head contribution in plain XLA (f32, negligible cost).
    item_c = _item_head_contrib(item.reshape(-1, 3), params)      # (B, 48) f32
    item_c = jnp.pad(item_c, ((0, 0), (0, PAD - item_c.shape[1])))  # (B, 128)

    tb = _choose_tb(b)
    b_pad = _round_up(b, tb)
    if b_pad != b:
        grid_flat = jnp.pad(grid_flat, ((0, b_pad - b), (0, 0)))
        item_c = jnp.pad(item_c, ((0, b_pad - b), (0, 0)))

    out_flat = pl.pallas_call(
        mask_estimator_kernel,
        out_shape=jax.ShapeDtypeStruct((b_pad, FLAT_DIM), jnp.float32),
        grid_spec=pltpu.PrefetchScalarGridSpec(
            num_scalar_prefetch=0,
            grid=(b_pad // tb,),
            in_specs=[
                pl.BlockSpec((tb, FLAT_DIM), lambda i: (i, 0)),          # grid tile
                pl.BlockSpec((tb, PAD), lambda i: (i, 0)),               # item contrib
                pl.BlockSpec((256, 128), lambda i: (0, 0)),              # w0 (resident)
                pl.BlockSpec((N_MID_SLOTS, 128, 128), lambda i: (0, 0, 0)),
                pl.BlockSpec((128, 256), lambda i: (0, 0)),              # w_last
                pl.BlockSpec((N_BIAS_ROWS, 1, 256), lambda i: (0, 0, 0)),
            ],
            out_specs=pl.BlockSpec((tb, FLAT_DIM), lambda i: (i, 0)),
        ),
        compiler_params=pltpu.CompilerParams(
            dimension_semantics=("parallel",),     # megacore split on v7x
        ),
    )(grid_flat, item_c, w0, w_mid, w_last, b_slab)

    return out_flat[:b].reshape(-1, H, W)


# ----------------------------------------------------------------------------
# Pure-JAX references.
#   compute_dtype=float32  -> exact PyTorch-module semantics (loose check).
#   compute_dtype=bfloat16 -> mirrors the kernel's mixed precision (tight check).
# ----------------------------------------------------------------------------
def mask_estimator_reference(grid, item, params, compute_dtype=jnp.float32):
    cd = compute_dtype

    def dense(x, w, b, relu, dt):
        y = jnp.dot(x.astype(dt), w.astype(dt),
                    preferred_element_type=jnp.float32) + b
        return jnp.maximum(y, 0.0) if relu else y

    H, W = GRID_SIZE
    h = grid.reshape(-1, H * W).astype(jnp.float32)
    for l, (_, _, relu) in enumerate(GRID_LAYERS):
        h = dense(h, params[2 * l], params[2 * l + 1], relu, cd)
    out_grid = h
    h = item.reshape(-1, 3).astype(jnp.float32)
    for l, (_, _, relu) in enumerate(ITEM_LAYERS):
        h = dense(h, params[12 + 2 * l], params[12 + 2 * l + 1], relu,
                  jnp.float32)                    # item branch is f32 in both paths
    out_item = h
    # First head layer written in split form (mathematically == concat form).
    w_o0, b_o0 = params[24], params[25]
    h = (jnp.dot(out_grid.astype(cd), w_o0[:24].astype(cd),
                 preferred_element_type=jnp.float32)
         + out_item @ w_o0[24:] + b_o0)
    h = jnp.maximum(h, 0.0)
    h = dense(h, params[26], params[27], True, cd)
    h = dense(h, params[28], params[29], False, cd)
    return h.reshape(-1, H, W)


if __name__ == "__main__":
    key = jax.random.PRNGKey(0)
    k_params, k_grid, k_item, k_grid2, k_item2 = jax.random.split(key, 5)

    params = init_params(k_params)
    packed = pack_params(params)

    # Case 1: small batch (single tile).
    B = 8
    grid_in = jax.random.uniform(k_grid, (B, *GRID_SIZE), jnp.float32)   # (8, 16, 16)
    item_in = jax.random.uniform(k_item, (B, 1, 3), jnp.float32)         # (8, 1, 3)
    out = jax.block_until_ready(mask_estimator_forward(grid_in, item_in, params, packed))
    assert out.shape == (B, *GRID_SIZE), out.shape
    ref_bf16 = mask_estimator_reference(grid_in, item_in, params, jnp.bfloat16)
    ref_f32 = mask_estimator_reference(grid_in, item_in, params, jnp.float32)
    assert jnp.allclose(out, ref_bf16, atol=2e-3, rtol=2e-3), "mismatch vs bf16 reference (B=8)"
    assert jnp.allclose(out, ref_f32, atol=3e-2, rtol=3e-2), "mismatch vs f32 reference (B=8)"

    # Case 2: batch exercising the multi-tile ("parallel") grid + padding path.
    B2 = 192
    grid_in2 = jax.random.uniform(k_grid2, (B2, *GRID_SIZE), jnp.float32)
    item_in2 = jax.random.uniform(k_item2, (B2, 1, 3), jnp.float32)
    out2 = jax.block_until_ready(mask_estimator_forward(grid_in2, item_in2, params, packed))
    assert out2.shape == (B2, *GRID_SIZE), out2.shape
    ref2_bf16 = mask_estimator_reference(grid_in2, item_in2, params, jnp.bfloat16)
    ref2_f32 = mask_estimator_reference(grid_in2, item_in2, params, jnp.float32)
    assert jnp.allclose(out2, ref2_bf16, atol=2e-3, rtol=2e-3), "mismatch vs bf16 reference (B=192)"
    assert jnp.allclose(out2, ref2_f32, atol=3e-2, rtol=3e-2), "mismatch vs f32 reference (B=192)"

    # TODO(synk): training utilities (BCEWithLogitsLoss loop, TensorBoard, DataLoader)
    # are host-side and intentionally not part of the kernel.
    print("KERNEL_OK")
</pallas_src>

<mosaic_0001>
module attributes {stable_mosaic.version = 11 : i64} {
  func.func @mask_estimator_kernel(%arg0: i32, %arg1: memref<16x256xbf16, #tpu.memory_space<vmem>>, %arg2: memref<16x128xf32, #tpu.memory_space<vmem>>, %arg3: memref<256x128xbf16, #tpu.memory_space<vmem>>, %arg4: memref<7x128x128xbf16, #tpu.memory_space<vmem>>, %arg5: memref<128x256xbf16, #tpu.memory_space<vmem>>, %arg6: memref<9x1x256xf32, #tpu.memory_space<vmem>>, %arg7: memref<16x256xf32, #tpu.memory_space<vmem>>) attributes {dimension_semantics = [#tpu.dimension_semantics<parallel>], iteration_bounds = array<i64: 1>, scalar_prefetch = 0 : i64, scratch_operands = 0 : i64, tpu.core_type = #tpu.core_type<tc>, window_params = [{transform_indices = @transform_0, window_bounds = array<i64: 16, 256>}, {transform_indices = @transform_1, window_bounds = array<i64: 16, 128>}, {pipeline_mode = #tpu.pipeline_mode<synchronous>, transform_indices = @transform_2, window_bounds = array<i64: 256, 128>}, {pipeline_mode = #tpu.pipeline_mode<synchronous>, transform_indices = @transform_3, window_bounds = array<i64: 7, 128, 128>}, {pipeline_mode = #tpu.pipeline_mode<synchronous>, transform_indices = @transform_4, window_bounds = array<i64: 128, 256>}, {pipeline_mode = #tpu.pipeline_mode<synchronous>, transform_indices = @transform_5, window_bounds = array<i64: 9, 1, 256>}, {transform_indices = @transform_6, window_bounds = array<i64: 16, 256>}]} {
    %c0 = arith.constant 0 : index
    %c0_0 = arith.constant 0 : index
    %0 = vector.load %arg1[%c0, %c0_0] : memref<16x256xbf16, #tpu.memory_space<vmem>>, vector<16x256xbf16>
    %c0_1 = arith.constant 0 : index
    %c0_2 = arith.constant 0 : index
    %1 = vector.load %arg3[%c0_1, %c0_2] : memref<256x128xbf16, #tpu.memory_space<vmem>>, vector<256x128xbf16>
    %cst = arith.constant dense<0.000000e+00> : vector<16x128xf32>
    %2 = tpu.matmul %0, %1, %cst {dimension_numbers = #tpu.dot_dimension_numbers<[1], [0], [0], [1], [0, 0, 1, 1], [], []>} : vector<16x256xbf16>, vector<256x128xbf16>, vector<16x128xf32> -> vector<16x128xf32>
    %c0_3 = arith.constant 0 : index
    %c0_4 = arith.constant 0 : index
    %c0_5 = arith.constant 0 : index
    %3 = vector.load %arg6[%c0_3, %c0_4, %c0_5] : memref<9x1x256xf32, #tpu.memory_space<vmem>>, vector<1x1x128xf32>
    %4 = vector.shape_cast %3 : vector<1x1x128xf32> to vector<1x128xf32>
    %5 = vector.broadcast %4 : vector<1x128xf32> to vector<16x128xf32>
    %6 = arith.addf %2, %5 : vector<16x128xf32>
    %cst_6 = arith.constant 0.000000e+00 : f32
    %7 = vector.broadcast %cst_6 : f32 to vector<16x128xf32>
    %8 = arith.maximumf %6, %7 : vector<16x128xf32>
    %9 = arith.truncf %8 : vector<16x128xf32> to vector<16x128xbf16>
    %c0_7 = arith.constant 0 : index
    %c0_8 = arith.constant 0 : index
    %c0_9 = arith.constant 0 : index
    %10 = vector.load %arg4[%c0_7, %c0_8, %c0_9] : memref<7x128x128xbf16, #tpu.memory_space<vmem>>, vector<1x128x128xbf16>
    %11 = vector.shape_cast %10 : vector<1x128x128xbf16> to vector<128x128xbf16>
    %cst_10 = arith.constant dense<0.000000e+00> : vector<16x128xf32>
    %12 = tpu.matmul %9, %11, %cst_10 {dimension_numbers = #tpu.dot_dimension_numbers<[1], [0], [0], [1], [0, 0, 1, 1], [], []>} : vector<16x128xbf16>, vector<128x128xbf16>, vector<16x128xf32> -> vector<16x128xf32>
    %c1 = arith.constant 1 : index
    %c0_11 = arith.constant 0 : index
    %c0_12 = arith.constant 0 : index
    %13 = vector.load %arg6[%c1, %c0_11, %c0_12] : memref<9x1x256xf32, #tpu.memory_space<vmem>>, vector<1x1x128xf32>
    %14 = vector.shape_cast %13 : vector<1x1x128xf32> to vector<1x128xf32>
    %15 = vector.broadcast %14 : vector<1x128xf32> to vector<16x128xf32>
    %16 = arith.addf %12, %15 : vector<16x128xf32>
    %cst_13 = arith.constant 0.000000e+00 : f32
    %17 = vector.broadcast %cst_13 : f32 to vector<16x128xf32>
    %18 = arith.maximumf %16, %17 : vector<16x128xf32>
    %19 = arith.truncf %18 : vector<16x128xf32> to vector<16x128xbf16>
    %c1_14 = arith.constant 1 : index
    %c0_15 = arith.constant 0 : index
    %c0_16 = arith.constant 0 : index
    %20 = vector.load %arg4[%c1_14, %c0_15, %c0_16] : memref<7x128x128xbf16, #tpu.memory_space<vmem>>, vector<1x128x128xbf16>
    %21 = vector.shape_cast %20 : vector<1x128x128xbf16> to vector<128x128xbf16>
    %cst_17 = arith.constant dense<0.000000e+00> : vector<16x128xf32>
    %22 = tpu.matmul %19, %21, %cst_17 {dimension_numbers = #tpu.dot_dimension_numbers<[1], [0], [0], [1], [0, 0, 1, 1], [], []>} : vector<16x128xbf16>, vector<128x128xbf16>, vector<16x128xf32> -> vector<16x128xf32>
    %c2 = arith.constant 2 : index
    %c0_18 = arith.constant 0 : index
    %c0_19 = arith.constant 0 : index
    %23 = vector.load %arg6[%c2, %c0_18, %c0_19] : memref<9x1x256xf32, #tpu.memory_space<vmem>>, vector<1x1x128xf32>
    %24 = vector.shape_cast %23 : vector<1x1x128xf32> to vector<1x128xf32>
    %25 = vector.broadcast %24 : vector<1x128xf32> to vector<16x128xf32>
    %26 = arith.addf %22, %25 : vector<16x128xf32>
    %cst_20 = arith.constant 0.000000e+00 : f32
    %27 = vector.broadcast %cst_20 : f32 to vector<16x128xf32>
    %28 = arith.maximumf %26, %27 : vector<16x128xf32>
    %29 = arith.truncf %28 : vector<16x128xf32> to vector<16x128xbf16>
    %c2_21 = arith.constant 2 : index
    %c0_22 = arith.constant 0 : index
    %c0_23 = arith.constant 0 : index
    %30 = vector.load %arg4[%c2_21, %c0_22, %c0_23] : memref<7x128x128xbf16, #tpu.memory_space<vmem>>, vector<1x128x128xbf16>
    %31 = vector.shape_cast %30 : vector<1x128x128xbf16> to vector<128x128xbf16>
    %cst_24 = arith.constant dense<0.000000e+00> : vector<16x128xf32>
    %32 = tpu.matmul %29, %31, %cst_24 {dimension_numbers = #tpu.dot_dimension_numbers<[1], [0], [0], [1], [0, 0, 1, 1], [], []>} : vector<16x128xbf16>, vector<128x128xbf16>, vector<16x128xf32> -> vector<16x128xf32>
    %c3 = arith.constant 3 : index
    %c0_25 = arith.constant 0 : index
    %c0_26 = arith.constant 0 : index
    %33 = vector.load %arg6[%c3, %c0_25, %c0_26] : memref<9x1x256xf32, #tpu.memory_space<vmem>>, vector<1x1x128xf32>
    %34 = vector.shape_cast %33 : vector<1x1x128xf32> to vector<1x128xf32>
    %35 = vector.broadcast %34 : vector<1x128xf32> to vector<16x128xf32>
    %36 = arith.addf %32, %35 : vector<16x128xf32>
    %cst_27 = arith.constant 0.000000e+00 : f32
    %37 = vector.broadcast %cst_27 : f32 to vector<16x128xf32>
    %38 = arith.maximumf %36, %37 : vector<16x128xf32>
    %39 = arith.truncf %38 : vector<16x128xf32> to vector<16x128xbf16>
    %c3_28 = arith.constant 3 : index
    %c0_29 = arith.constant 0 : index
    %c0_30 = arith.constant 0 : index
    %40 = vector.load %arg4[%c3_28, %c0_29, %c0_30] : memref<7x128x128xbf16, #tpu.memory_space<vmem>>, vector<1x128x128xbf16>
    %41 = vector.shape_cast %40 : vector<1x128x128xbf16> to vector<128x128xbf16>
    %cst_31 = arith.constant dense<0.000000e+00> : vector<16x128xf32>
    %42 = tpu.matmul %39, %41, %cst_31 {dimension_numbers = #tpu.dot_dimension_numbers<[1], [0], [0], [1], [0, 0, 1, 1], [], []>} : vector<16x128xbf16>, vector<128x128xbf16>, vector<16x128xf32> -> vector<16x128xf32>
    %c4 = arith.constant 4 : index
    %c0_32 = arith.constant 0 : index
    %c0_33 = arith.constant 0 : index
    %43 = vector.load %arg6[%c4, %c0_32, %c0_33] : memref<9x1x256xf32, #tpu.memory_space<vmem>>, vector<1x1x128xf32>
    %44 = vector.shape_cast %43 : vector<1x1x128xf32> to vector<1x128xf32>
    %45 = vector.broadcast %44 : vector<1x128xf32> to vector<16x128xf32>
    %46 = arith.addf %42, %45 : vector<16x128xf32>
    %cst_34 = arith.constant 0.000000e+00 : f32
    %47 = vector.broadcast %cst_34 : f32 to vector<16x128xf32>
    %48 = arith.maximumf %46, %47 : vector<16x128xf32>
    %49 = arith.truncf %48 : vector<16x128xf32> to vector<16x128xbf16>
    %c4_35 = arith.constant 4 : index
    %c0_36 = arith.constant 0 : index
    %c0_37 = arith.constant 0 : index
    %50 = vector.load %arg4[%c4_35, %c0_36, %c0_37] : memref<7x128x128xbf16, #tpu.memory_space<vmem>>, vector<1x128x128xbf16>
    %51 = vector.shape_cast %50 : vector<1x128x128xbf16> to vector<128x128xbf16>
    %cst_38 = arith.constant dense<0.000000e+00> : vector<16x128xf32>
    %52 = tpu.matmul %49, %51, %cst_38 {dimension_numbers = #tpu.dot_dimension_numbers<[1], [0], [0], [1], [0, 0, 1, 1], [], []>} : vector<16x128xbf16>, vector<128x128xbf16>, vector<16x128xf32> -> vector<16x128xf32>
    %c5 = arith.constant 5 : index
    %c0_39 = arith.constant 0 : index
    %c0_40 = arith.constant 0 : index
    %53 = vector.load %arg6[%c5, %c0_39, %c0_40] : memref<9x1x256xf32, #tpu.memory_space<vmem>>, vector<1x1x128xf32>
    %54 = vector.shape_cast %53 : vector<1x1x128xf32> to vector<1x128xf32>
    %55 = vector.broadcast %54 : vector<1x128xf32> to vector<16x128xf32>
    %56 = arith.addf %52, %55 : vector<16x128xf32>
    %57 = arith.truncf %56 : vector<16x128xf32> to vector<16x128xbf16>
    %c5_41 = arith.constant 5 : index
    %c0_42 = arith.constant 0 : index
    %c0_43 = arith.constant 0 : index
    %58 = vector.load %arg4[%c5_41, %c0_42, %c0_43] : memref<7x128x128xbf16, #tpu.memory_space<vmem>>, vector<1x128x128xbf16>
    %59 = vector.shape_cast %58 : vector<1x128x128xbf16> to vector<128x128xbf16>
    %cst_44 = arith.constant dense<0.000000e+00> : vector<16x128xf32>
    %60 = tpu.matmul %57, %59, %cst_44 {dimension_numbers = #tpu.dot_dimension_numbers<[1], [0], [0], [1], [0, 0, 1, 1], [], []>} : vector<16x128xbf16>, vector<128x128xbf16>, vector<16x128xf32> -> vector<16x128xf32>
    %c0_45 = arith.constant 0 : index
    %c0_46 = arith.constant 0 : index
    %61 = vector.load %arg2[%c0_45, %c0_46] : memref<16x128xf32, #tpu.memory_space<vmem>>, vector<16x128xf32>
    %62 = arith.addf %60, %61 : vector<16x128xf32>
    %c6 = arith.constant 6 : index
    %c0_47 = arith.constant 0 : index
    %c0_48 = arith.constant 0 : index
    %63 = vector.load %arg6[%c6, %c0_47, %c0_48] : memref<9x1x256xf32, #tpu.memory_space<vmem>>, vector<1x1x128xf32>
    %64 = vector.shape_cast %63 : vector<1x1x128xf32> to vector<1x128xf32>
    %65 = vector.broadcast %64 : vector<1x128xf32> to vector<16x128xf32>
    %66 = arith.addf %62, %65 : vector<16x128xf32>
    %cst_49 = arith.constant 0.000000e+00 : f32
    %67 = vector.broadcast %cst_49 : f32 to vector<16x128xf32>
    %68 = arith.maximumf %66, %67 : vector<16x128xf32>
    %69 = arith.truncf %68 : vector<16x128xf32> to vector<16x128xbf16>
    %c6_50 = arith.constant 6 : index
    %c0_51 = arith.constant 0 : index
    %c0_52 = arith.constant 0 : index
    %70 = vector.load %arg4[%c6_50, %c0_51, %c0_52] : memref<7x128x128xbf16, #tpu.memory_space<vmem>>, vector<1x128x128xbf16>
    %71 = vector.shape_cast %70 : vector<1x128x128xbf16> to vector<128x128xbf16>
    %cst_53 = arith.constant dense<0.000000e+00> : vector<16x128xf32>
    %72 = tpu.matmul %69, %71, %cst_53 {dimension_numbers = #tpu.dot_dimension_numbers<[1], [0], [0], [1], [0, 0, 1, 1], [], []>} : vector<16x128xbf16>, vector<128x128xbf16>, vector<16x128xf32> -> vector<16x128xf32>
    %c7 = arith.constant 7 : index
    %c0_54 = arith.constant 0 : index
    %c0_55 = arith.constant 0 : index
    %73 = vector.load %arg6[%c7, %c0_54, %c0_55] : memref<9x1x256xf32, #tpu.memory_space<vmem>>, vector<1x1x128xf32>
    %74 = vector.shape_cast %73 : vector<1x1x128xf32> to vector<1x128xf32>
    %75 = vector.broadcast %74 : vector<1x128xf32> to vector<16x128xf32>
    %76 = arith.addf %72, %75 : vector<16x128xf32>
    %cst_56 = arith.constant 0.000000e+00 : f32
    %77 = vector.broadcast %cst_56 : f32 to vector<16x128xf32>
    %78 = arith.maximumf %76, %77 : vector<16x128xf32>
    %79 = arith.truncf %78 : vector<16x128xf32> to vector<16x128xbf16>
    %c0_57 = arith.constant 0 : index
    %c0_58 = arith.constant 0 : index
    %80 = vector.load %arg5[%c0_57, %c0_58] : memref<128x256xbf16, #tpu.memory_space<vmem>>, vector<128x256xbf16>
    %cst_59 = arith.constant dense<0.000000e+00> : vector<16x256xf32>
    %81 = tpu.matmul %79, %80, %cst_59 {dimension_numbers = #tpu.dot_dimension_numbers<[1], [0], [0], [1], [0, 0, 1, 1], [], []>} : vector<16x128xbf16>, vector<128x256xbf16>, vector<16x256xf32> -> vector<16x256xf32>
    %c8 = arith.constant 8 : index
    %c0_60 = arith.constant 0 : index
    %c0_61 = arith.constant 0 : index
    %82 = vector.load %arg6[%c8, %c0_60, %c0_61] : memref<9x1x256xf32, #tpu.memory_space<vmem>>, vector<1x1x256xf32>
    %83 = vector.shape_cast %82 : vector<1x1x256xf32> to vector<1x256xf32>
    %84 = vector.broadcast %83 : vector<1x256xf32> to vector<16x256xf32>
    %85 = arith.addf %81, %84 : vector<16x256xf32>
    %c0_62 = arith.constant 0 : index
    %c0_63 = arith.constant 0 : index
    %86 = vector.load %arg7[%c0_62, %c0_63] : memref<16x256xf32, #tpu.memory_space<vmem>>, vector<16x256xf32>
    tpu.vector_store %arg7[%c0_62, %c0_63], %85 {strides = array<i32>} : memref<16x256xf32, #tpu.memory_space<vmem>>, vector<16x256xf32>,
    return
  }
  func.func @transform_0(%arg0: i32) -> (i32, i32) {
    %c0_i32 = arith.constant 0 : i32
    %c0_i32_0 = arith.constant 0 : i32
    return %arg0, %c0_i32 : i32, i32
  }
  func.func @transform_1(%arg0: i32) -> (i32, i32) {
    %c0_i32 = arith.constant 0 : i32
    %c0_i32_0 = arith.constant 0 : i32
    return %arg0, %c0_i32 : i32, i32
  }
  func.func @transform_2(%arg0: i32) -> (i32, i32) {
    %c0_i32 = arith.constant 0 : i32
    %c0_i32_0 = arith.constant 0 : i32
    %c0_i32_1 = arith.constant 0 : i32
    return %c0_i32, %c0_i32_0 : i32, i32
  }
  func.func @transform_3(%arg0: i32) -> (i32, i32, i32) {
    %c0_i32 = arith.constant 0 : i32
    %c0_i32_0 = arith.constant 0 : i32
    %c0_i32_1 = arith.constant 0 : i32
    %c0_i32_2 = arith.constant 0 : i32
    return %c0_i32, %c0_i32_0, %c0_i32_1 : i32, i32, i32
  }
  func.func @transform_4(%arg0: i32) -> (i32, i32) {
    %c0_i32 = arith.constant 0 : i32
    %c0_i32_0 = arith.constant 0 : i32
    %c0_i32_1 = arith.constant 0 : i32
    return %c0_i32, %c0_i32_0 : i32, i32
  }
  func.func @transform_5(%arg0: i32) -> (i32, i32, i32) {
    %c0_i32 = arith.constant 0 : i32
    %c0_i32_0 = arith.constant 0 : i32
    %c0_i32_1 = arith.constant 0 : i32
    %c0_i32_2 = arith.constant 0 : i32
    return %c0_i32, %c0_i32_0, %c0_i32_1 : i32, i32, i32
  }
  func.func @transform_6(%arg0: i32) -> (i32, i32) {
    %c0_i32 = arith.constant 0 : i32
    %c0_i32_0 = arith.constant 0 : i32
    return %arg0, %c0_i32 : i32, i32
  }
}

</mosaic_0001>

<llo_original>
// kernel: mask_estimator_forward.1
$region0: #{mask_estimator_forward.1}
  #allocation0 [shape = 'u32[]', space=smem, size = 0x4, offset = 0x4, fixed_abs, tag = 'smem constant byte address 0x4 - core index']
  #allocation1 [shape = 'u32[144,128]{1,0:T(1,128)}', space=vmem, size = 0x12000, scoped, tag = 'internal scratch']
  %s0 = inlined_call_operand.vmem [shape: bf16[16,256], index: 0, kind: input, shape index: {}]
  %s1 = inlined_call_operand.vmem [shape: f32[16,128], index: 1, kind: input, shape index: {}]
  %s2 = inlined_call_operand.vmem [shape: bf16[256,128], index: 2, kind: input, shape index: {}]
  %s3 = inlined_call_operand.vmem [shape: bf16[7,128,128], index: 3, kind: input, shape index: {}]
  %s4 = inlined_call_operand.hbm [shape: bf16[128,256], index: 4, kind: input, shape index: {}]
  %s5 = inlined_call_operand.hbm [shape: f32[9,1,256], index: 5, kind: input, shape index: {}]
  %s6 = inlined_call_operand.vmem [shape: f32[16,256], index: 6, kind: output, shape index: {}]
  %s7 = sld [smem:[#allocation0]]
  $region42: #{mask_estimator_forward.1} parent=0
    _
  %s9 = ssub.s32 1, %s7
  %s10 = scalar_select 0, %s9, %s7
  $region1: #{mask_estimator_forward.1} parent=0
    #allocation2 [shape = 'u8[65536]{0}', space=vmem, size = 0x10000, scoped, tag = 'input window, operand 4, single buffered']
    #allocation3 [shape = 's32[1]{0}', space=sflag, size = 0x4, scoped, tag = 'scoped memory for mask_estimator_forward.1']
    #allocation4 [shape = 'u8[9216]{0}', space=vmem, size = 0x2400, scoped, tag = 'input window, operand 5, single buffered']
    #allocation5 [shape = 's32[1]{0}', space=sflag, size = 0x4, scoped, tag = 'scoped memory for mask_estimator_forward.1']
    %11 = vsyncpa [#allocation3], 0
    %12 = vsyncpa [#allocation5], 0
    // Predicated region
    $region2: #{mask_estimator_forward.1} parent=1 // pred_check
      _
    $region3: #{mask_estimator_forward.1} parent=1 // pred_check_branch
      %14 = sbr.rel (0) target = $region5
    $region4: #{mask_estimator_forward.1} parent=1 // pred_region
      _
    $region5: #{mask_estimator_forward.1} parent=1 // pred_fallthru
      _
    // Predicated region
    $region6: #{mask_estimator_forward.1} parent=1 // pred_check
      _
    $region7: #{mask_estimator_forward.1} parent=1 // pred_check_branch
      %16 = sbr.rel (0) target = $region9
    $region8: #{mask_estimator_forward.1} parent=1 // pred_region
      _
    $region9: #{mask_estimator_forward.1} parent=1 // pred_fallthru
      _
    // Predicated region
    $region10: #{mask_estimator_forward.1} parent=1 // pred_check
      _
    $region11: #{mask_estimator_forward.1} parent=1 // pred_check_branch
      %18 = sbr.rel (0) target = $region13
    $region12: #{mask_estimator_forward.1} parent=1 // pred_region
      _
    $region13: #{mask_estimator_forward.1} parent=1 // pred_fallthru
      _
    // Predicated region
    $region14: #{mask_estimator_forward.1} parent=1 // pred_check
      _
    $region15: #{mask_estimator_forward.1} parent=1 // pred_check_branch
      %20 = sbr.rel (0) target = $region17
    $region16: #{mask_estimator_forward.1} parent=1 // pred_region
      _
    $region17: #{mask_estimator_forward.1} parent=1 // pred_fallthru
      _
    // Predicated region
    $region18: #{mask_estimator_forward.1} parent=1 // pred_check
      _
    $region19: #{mask_estimator_forward.1} parent=1 // pred_check_branch
      %22 = sbr.rel (0) target = $region21
    $region20: #{mask_estimator_forward.1} parent=1 // pred_region
      %s24 = ssub.s32 2048, 2048
      %25 = vsyncadd [#allocation3], %s24
      %s26 = sshll.u32 [#allocation2], 4
      %s27 = int_to_ptr.vmem [resolvable:$true] %s26
      %32 = dma.hbm_to_vmem [thread:$0]  %s4, 2048, %s27, [#allocation3], 128, 128, 8
    $region21: #{mask_estimator_forward.1} parent=1 // pred_fallthru
      _
    // Predicated region
    $region22: #{mask_estimator_forward.1} parent=1 // pred_check
      _
    $region23: #{mask_estimator_forward.1} parent=1 // pred_check_branch
      %34 = sbr.rel (0) target = $region25
    $region24: #{mask_estimator_forward.1} parent=1 // pred_region
      %s36 = ssub.s32 288, 288
      %37 = vsyncadd [#allocation5], %s36
      %s38 = sshll.u32 [#allocation4], 4
      %s39 = int_to_ptr.vmem [resolvable:$true] %s38
      %44 = dma.hbm_to_vmem [thread:$0]  %s5, 288, %s39, [#allocation5], 32, 32, 2
    $region25: #{mask_estimator_forward.1} parent=1 // pred_fallthru
      _
    // Predicated region
    $region26: #{mask_estimator_forward.1} parent=1 // pred_check
      _
    $region27: #{mask_estimator_forward.1} parent=1 // pred_check_branch
      %46 = sbr.rel (0) target = $region29
    $region28: #{mask_estimator_forward.1} parent=1 // pred_region
      %47 = dma.done [#allocation3], 2048
    $region29: #{mask_estimator_forward.1} parent=1 // pred_fallthru
      _
    // Predicated region
    $region30: #{mask_estimator_forward.1} parent=1 // pred_check
      _
    $region31: #{mask_estimator_forward.1} parent=1 // pred_check_branch
      %49 = sbr.rel (0) target = $region33
    $region32: #{mask_estimator_forward.1} parent=1 // pred_region
      %50 = dma.done [#allocation5], 288
    $region33: #{mask_estimator_forward.1} parent=1 // pred_fallthru
      _
    %v52 = vld [vmem:[%s0] sm:$0xff]
    %v53 = vld [vmem:[%s0 + $0x8] sm:$0xff]
    %v54 = vld [vmem:[%s2] sm:$0xf]
    %v55 = vld [vmem:[%s2 + $0x4] sm:$0xf]
    %v56 = vld [vmem:[%s2 + $0x8] sm:$0xf]
    %v57 = vld [vmem:[%s2 + $0xc] sm:$0xf]
    %v58 = vld [vmem:[%s2 + $0x10] sm:$0xf]
    %v59 = vld [vmem:[%s2 + $0x14] sm:$0xf]
    %v60 = vld [vmem:[%s2 + $0x18] sm:$0xf]
    %v61 = vld [vmem:[%s2 + $0x1c] sm:$0xf]
    %v62 = vld [vmem:[%s2 + $0x20] sm:$0xf]
    %v63 = vld [vmem:[%s2 + $0x24] sm:$0xf]
    %v64 = vld [vmem:[%s2 + $0x28] sm:$0xf]
    %v65 = vld [vmem:[%s2 + $0x2c] sm:$0xf]
    %v66 = vld [vmem:[%s2 + $0x30] sm:$0xf]
    %v67 = vld [vmem:[%s2 + $0x34] sm:$0xf]
    %v68 = vld [vmem:[%s2 + $0x38] sm:$0xf]
    %v69 = vld [vmem:[%s2 + $0x3c] sm:$0xf]
    %v70 = vld [vmem:[%s2 + $0x40] sm:$0xf]
    %v71 = vld [vmem:[%s2 + $0x44] sm:$0xf]
    %v72 = vld [vmem:[%s2 + $0x48] sm:$0xf]
    %v73 = vld [vmem:[%s2 + $0x4c] sm:$0xf]
    %v74 = vld [vmem:[%s2 + $0x50] sm:$0xf]
    %v75 = vld [vmem:[%s2 + $0x54] sm:$0xf]
    %v76 = vld [vmem:[%s2 + $0x58] sm:$0xf]
    %v77 = vld [vmem:[%s2 + $0x5c] sm:$0xf]
    %v78 = vld [vmem:[%s2 + $0x60] sm:$0xf]
    %v79 = vld [vmem:[%s2 + $0x64] sm:$0xf]
    %v80 = vld [vmem:[%s2 + $0x68] sm:$0xf]
    %v81 = vld [vmem:[%s2 + $0x6c] sm:$0xf]
    %v82 = vld [vmem:[%s2 + $0x70] sm:$0xf]
    %v83 = vld [vmem:[%s2 + $0x74] sm:$0xf]
    %v84 = vld [vmem:[%s2 + $0x78] sm:$0xf]
    %v85 = vld [vmem:[%s2 + $0x7c] sm:$0xf]
    %v86 = vld [vmem:[#allocation4] sm:$0x1]
    %v88 = vlaneseq
    %v89 = vshrl.u32 %v88, 7
    %v90 = vsub.s32 0, %v89
    %v91 = vrot.slane %v86, %v90
    %v95 = vunpack.c.l.b16 %v52
    %v96 = vunpack.c.h.b16 %v52
    %v97 = vunpack.c.l.b16 %v53
    %v98 = vunpack.c.h.b16 %v53
    %v99 = vpack.c.b16 %v97, %v95
    %v100 = vpack.c.b16 %v98, %v96
    %v135 = vunpack.c.l.b16 %v54
    %v136 = vunpack.c.l.b16 %v55
    %v137 = vunpack.c.l.b16 %v56
    %v138 = vunpack.c.l.b16 %v57
    %v139 = vunpack.c.l.b16 %v58
    %v140 = vunpack.c.l.b16 %v59
    %v141 = vunpack.c.l.b16 %v60
    %v142 = vunpack.c.l.b16 %v61
    %v143 = vunpack.c.l.b16 %v62
    %v144 = vunpack.c.l.b16 %v63
    %v145 = vunpack.c.l.b16 %v64
    %v146 = vunpack.c.l.b16 %v65
    %v147 = vunpack.c.l.b16 %v66
    %v148 = vunpack.c.l.b16 %v67
    %v149 = vunpack.c.l.b16 %v68
    %v150 = vunpack.c.l.b16 %v69
    %v151 = vunpack.c.l.b16 %v70
    %v152 = vunpack.c.l.b16 %v71
    %v153 = vunpack.c.l.b16 %v72
    %v154 = vunpack.c.l.b16 %v73
    %v155 = vunpack.c.l.b16 %v74
    %v156 = vunpack.c.l.b16 %v75
    %v157 = vunpack.c.l.b16 %v76
    %v158 = vunpack.c.l.b16 %v77
    %v159 = vunpack.c.l.b16 %v78
    %v160 = vunpack.c.l.b16 %v79
    %v161 = vunpack.c.l.b16 %v80
    %v162 = vunpack.c.l.b16 %v81
    %v163 = vunpack.c.l.b16 %v82
    %v164 = vunpack.c.l.b16 %v83
    %v165 = vunpack.c.l.b16 %v84
    %v166 = vunpack.c.l.b16 %v85
    %v167 = vpack.c.b16 %v136, %v135
    %v168 = vpack.c.b16 %v138, %v137
    %v169 = vpack.c.b16 %v140, %v139
    %v170 = vpack.c.b16 %v142, %v141
    %v171 = vpack.c.b16 %v144, %v143
    %v172 = vpack.c.b16 %v146, %v145
    %v173 = vpack.c.b16 %v148, %v147
    %v174 = vpack.c.b16 %v150, %v149
    %v175 = vpack.c.b16 %v152, %v151
    %v176 = vpack.c.b16 %v154, %v153
    %v177 = vpack.c.b16 %v156, %v155
    %v178 = vpack.c.b16 %v158, %v157
    %v179 = vpack.c.b16 %v160, %v159
    %v180 = vpack.c.b16 %v162, %v161
    %v181 = vpack.c.b16 %v164, %v163
    %v182 = vpack.c.b16 %v166, %v165
    %199 = vmatprep.subr.bf16.mxu0 0
    %200 = vmatpush1.bf16.msra.mxu0 %v167
    %201 = vmatprep.subr.bf16.mxu0 0
    %202 = vmatpush1.bf16.msra.mxu0 %v168
    %203 = vmatprep.subr.bf16.mxu0 0
    %204 = vmatpush1.bf16.msra.mxu0 %v169
    %205 = vmatprep.subr.bf16.mxu0 0
    %206 = vmatpush1.bf16.msra.mxu0 %v170
    %207 = vmatprep.subr.bf16.mxu0 0
    %208 = vmatpush1.bf16.msra.mxu0 %v171
    %209 = vmatprep.subr.bf16.mxu0 0
    %210 = vmatpush1.bf16.msra.mxu0 %v172
    %211 = vmatprep.subr.bf16.mxu0 0
    %212 = vmatpush1.bf16.msra.mxu0 %v173
    %213 = vmatprep.subr.bf16.mxu0 0
    %214 = vmatpush1.bf16.msra.mxu0 %v174
    %215 = vmatprep.subr.bf16.mxu0 0
    %216 = vmatpush1.bf16.msra.mxu0 %v175
    %217 = vmatprep.subr.bf16.mxu0 0
    %218 = vmatpush1.bf16.msra.mxu0 %v176
    %219 = vmatprep.subr.bf16.mxu0 0
    %220 = vmatpush1.bf16.msra.mxu0 %v177
    %221 = vmatprep.subr.bf16.mxu0 0
    %222 = vmatpush1.bf16.msra.mxu0 %v178
    %223 = vmatprep.subr.bf16.mxu0 0
    %224 = vmatpush1.bf16.msra.mxu0 %v179
    %225 = vmatprep.subr.bf16.mxu0 0
    %226 = vmatpush1.bf16.msra.mxu0 %v180
    %227 = vmatprep.subr.bf16.mxu0 0
    %228 = vmatpush1.bf16.msra.mxu0 %v181
    %229 = vmatprep.subr.bf16.mxu0 0
    %230 = vmatpush1.bf16.msra.mxu0 %v182
    %231 = vmatprep.mubr.bf16.mxu0 %v100
    %232 = vmatmul.mubr.bf16.gmra.mrb[0].mxu0 %v99
    %v233 = vpop.f32.mrb[0].mxu0
    %v234 = vadd.f32 %v91, %v233
    %v235 = vpop.f32.mrb[0].mxu0
    %v236 = vpop.f32.mrb[0].mxu0
    %v237 = vadd.f32 %v91, %v236
    %v238 = vpop.f32.mrb[0].mxu0
    %239 = vdwg.mxu0
    %v240 = vmax.f32 %v234, 0.0
    %v241 = vmax.f32 %v237, 0.0
    %v242 = vpack.c.bf16 %v241, %v240
    %v243 = vld [vmem:[%s3] sm:$0xf]
    %v244 = vld [vmem:[%s3 + $0x4] sm:$0xf]
    %v245 = vld [vmem:[%s3 + $0x8] sm:$0xf]
    %v246 = vld [vmem:[%s3 + $0xc] sm:$0xf]
    %v247 = vld [vmem:[%s3 + $0x10] sm:$0xf]
    %v248 = vld [vmem:[%s3 + $0x14] sm:$0xf]
    %v249 = vld [vmem:[%s3 + $0x18] sm:$0xf]
    %v250 = vld [vmem:[%s3 + $0x1c] sm:$0xf]
    %v251 = vld [vmem:[%s3 + $0x20] sm:$0xf]
    %v252 = vld [vmem:[%s3 + $0x24] sm:$0xf]
    %v253 = vld [vmem:[%s3 + $0x28] sm:$0xf]
    %v254 = vld [vmem:[%s3 + $0x2c] sm:$0xf]
    %v255 = vld [vmem:[%s3 + $0x30] sm:$0xf]
    %v256 = vld [vmem:[%s3 + $0x34] sm:$0xf]
    %v257 = vld [vmem:[%s3 + $0x38] sm:$0xf]
    %v258 = vld [vmem:[%s3 + $0x3c] sm:$0xf]
    %s259 = scalar_lea.vmem [#allocation4], 2
    %v260 = vld [vmem:[%s259] sm:$0x1]
    %v262 = vlaneseq
    %v263 = vshrl.u32 %v262, 7
    %v264 = vsub.s32 0, %v263
    %v265 = vrot.slane %v260, %v264
    %v283 = vunpack.c.l.b16 %v243
    %v284 = vunpack.c.l.b16 %v244
    %v285 = vunpack.c.l.b16 %v245
    %v286 = vunpack.c.l.b16 %v246
    %v287 = vunpack.c.l.b16 %v247
    %v288 = vunpack.c.l.b16 %v248
    %v289 = vunpack.c.l.b16 %v249
    %v290 = vunpack.c.l.b16 %v250
    %v291 = vunpack.c.l.b16 %v251
    %v292 = vunpack.c.l.b16 %v252
    %v293 = vunpack.c.l.b16 %v253
    %v294 = vunpack.c.l.b16 %v254
    %v295 = vunpack.c.l.b16 %v255
    %v296 = vunpack.c.l.b16 %v256
    %v297 = vunpack.c.l.b16 %v257
    %v298 = vunpack.c.l.b16 %v258
    %v299 = vpack.c.b16 %v284, %v283
    %v300 = vpack.c.b16 %v286, %v285
    %v301 = vpack.c.b16 %v288, %v287
    %v302 = vpack.c.b16 %v290, %v289
    %v303 = vpack.c.b16 %v292, %v291
    %v304 = vpack.c.b16 %v294, %v293
    %v305 = vpack.c.b16 %v296, %v295
    %v306 = vpack.c.b16 %v298, %v297
    %315 = vmatprep.subr.bf16.mxu0 0
    %316 = vmatpush1.bf16.msra.mxu0 %v299
    %317 = vmatprep.subr.bf16.mxu0 0
    %318 = vmatpush1.bf16.msra.mxu0 %v300
    %319 = vmatprep.subr.bf16.mxu0 0
    %320 = vmatpush1.bf16.msra.mxu0 %v301
    %321 = vmatprep.subr.bf16.mxu0 0
    %322 = vmatpush1.bf16.msra.mxu0 %v302
    %323 = vmatprep.subr.bf16.mxu0 0
    %324 = vmatpush1.bf16.msra.mxu0 %v303
    %325 = vmatprep.subr.bf16.mxu0 0
    %326 = vmatpush1.bf16.msra.mxu0 %v304
    %327 = vmatprep.subr.bf16.mxu0 0
    %328 = vmatpush1.bf16.msra.mxu0 %v305
    %329 = vmatprep.subr.bf16.mxu0 0
    %330 = vmatpush1.bf16.msra.mxu0 %v306
    %331 = vmatprep.subr.bf16.mxu0 0
    %332 = vmatpush1.bf16.msra.mxu0 0
    %333 = vmatprep.subr.bf16.mxu0 0
    %334 = vmatpush1.bf16.msra.mxu0 0
    %335 = vmatprep.subr.bf16.mxu0 0
    %336 = vmatpush1.bf16.msra.mxu0 0
    %337 = vmatprep.subr.bf16.mxu0 0
    %338 = vmatpush1.bf16.msra.mxu0 0
    %339 = vmatprep.subr.bf16.mxu0 0
    %340 = vmatpush1.bf16.msra.mxu0 0
    %341 = vmatprep.subr.bf16.mxu0 0
    %342 = vmatpush1.bf16.msra.mxu0 0
    %343 = vmatprep.subr.bf16.mxu0 0
    %344 = vmatpush1.bf16.msra.mxu0 0
    %345 = vmatprep.subr.bf16.mxu0 0
    %346 = vmatpush1.bf16.msra.mxu0 0
    %347 = vmatprep.mubr.bf16.mxu0 0
    %348 = vmatmul.mubr.bf16.gmra.mrb[0].mxu0 %v242
    %v349 = vpop.f32.mrb[0].mxu0
    %v350 = vadd.f32 %v265, %v349
    %v351 = vpop.f32.mrb[0].mxu0
    %v352 = vpop.f32.mrb[0].mxu0
    %v353 = vadd.f32 %v265, %v352
    %v354 = vpop.f32.mrb[0].mxu0
    %355 = vdwg.mxu0
    %v356 = vmax.f32 %v350, 0.0
    %v357 = vmax.f32 %v353, 0.0
    %v358 = vpack.c.bf16 %v357, %v356
    %s359 = scalar_lea.vmem %s3, 64
    %v360 = vld [vmem:[%s359] sm:$0xf]
    %v361 = vld [vmem:[%s359 + $0x4] sm:$0xf]
    %v362 = vld [vmem:[%s359 + $0x8] sm:$0xf]
    %v363 = vld [vmem:[%s359 + $0xc] sm:$0xf]
    %v364 = vld [vmem:[%s359 + $0x10] sm:$0xf]
    %v365 = vld [vmem:[%s359 + $0x14] sm:$0xf]
    %v366 = vld [vmem:[%s359 + $0x18] sm:$0xf]
    %v367 = vld [vmem:[%s359 + $0x1c] sm:$0xf]
    %v368 = vld [vmem:[%s359 + $0x20] sm:$0xf]
    %v369 = vld [vmem:[%s359 + $0x24] sm:$0xf]
    %v370 = vld [vmem:[%s359 + $0x28] sm:$0xf]
    %v371 = vld [vmem:[%s359 + $0x2c] sm:$0xf]
    %v372 = vld [vmem:[%s359 + $0x30] sm:$0xf]
    %v373 = vld [vmem:[%s359 + $0x34] sm:$0xf]
    %v374 = vld [vmem:[%s359 + $0x38] sm:$0xf]
    %v375 = vld [vmem:[%s359 + $0x3c] sm:$0xf]
    %s376 = scalar_lea.vmem [#allocation4], 4
    %v377 = vld [vmem:[%s376] sm:$0x1]
    %v379 = vlaneseq
    %v380 = vshrl.u32 %v379, 7
    %v381 = vsub.s32 0, %v380
    %v382 = vrot.slane %v377, %v381
    %v400 = vunpack.c.l.b16 %v360
    %v401 = vunpack.c.l.b16 %v361
    %v402 = vunpack.c.l.b16 %v362
    %v403 = vunpack.c.l.b16 %v363
    %v404 = vunpack.c.l.b16 %v364
    %v405 = vunpack.c.l.b16 %v365
    %v406 = vunpack.c.l.b16 %v366
    %v407 = vunpack.c.l.b16 %v367
    %v408 = vunpack.c.l.b16 %v368
    %v409 = vunpack.c.l.b16 %v369
    %v410 = vunpack.c.l.b16 %v370
    %v411 = vunpack.c.l.b16 %v371
    %v412 = vunpack.c.l.b16 %v372
    %v413 = vunpack.c.l.b16 %v373
    %v414 = vunpack.c.l.b16 %v374
    %v415 = vunpack.c.l.b16 %v375
    %v416 = vpack.c.b16 %v401, %v400
    %v417 = vpack.c.b16 %v403, %v402
    %v418 = vpack.c.b16 %v405, %v404
    %v419 = vpack.c.b16 %v407, %v406
    %v420 = vpack.c.b16 %v409, %v408
    %v421 = vpack.c.b16 %v411, %v410
    %v422 = vpack.c.b16 %v413, %v412
    %v423 = vpack.c.b16 %v415, %v414
    %432 = vmatprep.subr.bf16.mxu0 0
    %433 = vmatpush1.bf16.msra.mxu0 %v416
    %434 = vmatprep.subr.bf16.mxu0 0
    %435 = vmatpush1.bf16.msra.mxu0 %v417
    %436 = vmatprep.subr.bf16.mxu0 0
    %437 = vmatpush1.bf16.msra.mxu0 %v418
    %438 = vmatprep.subr.bf16.mxu0 0
    %439 = vmatpush1.bf16.msra.mxu0 %v419
    %440 = vmatprep.subr.bf16.mxu0 0
    %441 = vmatpush1.bf16.msra.mxu0 %v420
    %442 = vmatprep.subr.bf16.mxu0 0
    %443 = vmatpush1.bf16.msra.mxu0 %v421
    %444 = vmatprep.subr.bf16.mxu0 0
    %445 = vmatpush1.bf16.msra.mxu0 %v422
    %446 = vmatprep.subr.bf16.mxu0 0
    %447 = vmatpush1.bf16.msra.mxu0 %v423
    %448 = vmatprep.subr.bf16.mxu0 0
    %449 = vmatpush1.bf16.msra.mxu0 0
    %450 = vmatprep.subr.bf16.mxu0 0
    %451 = vmatpush1.bf16.msra.mxu0 0
    %452 = vmatprep.subr.bf16.mxu0 0
    %453 = vmatpush1.bf16.msra.mxu0 0
    %454 = vmatprep.subr.bf16.mxu0 0
    %455 = vmatpush1.bf16.msra.mxu0 0
    %456 = vmatprep.subr.bf16.mxu0 0
    %457 = vmatpush1.bf16.msra.mxu0 0
    %458 = vmatprep.subr.bf16.mxu0 0
    %459 = vmatpush1.bf16.msra.mxu0 0
    %460 = vmatprep.subr.bf16.mxu0 0
    %461 = vmatpush1.bf16.msra.mxu0 0
    %462 = vmatprep.subr.bf16.mxu0 0
    %463 = vmatpush1.bf16.msra.mxu0 0
    %464 = vmatprep.mubr.bf16.mxu0 0
    %465 = vmatmul.mubr.bf16.gmra.mrb[0].mxu0 %v358
    %v466 = vpop.f32.mrb[0].mxu0
    %v467 = vadd.f32 %v382, %v466
    %v468 = vpop.f32.mrb[0].mxu0
    %v469 = vpop.f32.mrb[0].mxu0
    %v470 = vadd.f32 %v382, %v469
    %v471 = vpop.f32.mrb[0].mxu0
    %472 = vdwg.mxu0
    %v473 = vmax.f32 %v467, 0.0
    %v474 = vmax.f32 %v470, 0.0
    %v475 = vpack.c.bf16 %v474, %v473
    %s476 = scalar_lea.vmem %s3, 128
    %v477 = vld [vmem:[%s476] sm:$0xf]
    %v478 = vld [vmem:[%s476 + $0x4] sm:$0xf]
    %v479 = vld [vmem:[%s476 + $0x8] sm:$0xf]
    %v480 = vld [vmem:[%s476 + $0xc] sm:$0xf]
    %v481 = vld [vmem:[%s476 + $0x10] sm:$0xf]
    %v482 = vld [vmem:[%s476 + $0x14] sm:$0xf]
    %v483 = vld [vmem:[%s476 + $0x18] sm:$0xf]
    %v484 = vld [vmem:[%s476 + $0x1c] sm:$0xf]
    %v485 = vld [vmem:[%s476 + $0x20] sm:$0xf]
    %v486 = vld [vmem:[%s476 + $0x24] sm:$0xf]
    %v487 = vld [vmem:[%s476 + $0x28] sm:$0xf]
    %v488 = vld [vmem:[%s476 + $0x2c] sm:$0xf]
    %v489 = vld [vmem:[%s476 + $0x30] sm:$0xf]
    %v490 = vld [vmem:[%s476 + $0x34] sm:$0xf]
    %v491 = vld [vmem:[%s476 + $0x38] sm:$0xf]
    %v492 = vld [vmem:[%s476 + $0x3c] sm:$0xf]
    %s493 = scalar_lea.vmem [#allocation4], 6
    %v494 = vld [vmem:[%s493] sm:$0x1]
    %v496 = vlaneseq
    %v497 = vshrl.u32 %v496, 7
    %v498 = vsub.s32 0, %v497
    %v499 = vrot.slane %v494, %v498
    %v517 = vunpack.c.l.b16 %v477
    %v518 = vunpack.c.l.b16 %v478
    %v519 = vunpack.c.l.b16 %v479
    %v520 = vunpack.c.l.b16 %v480
    %v521 = vunpack.c.l.b16 %v481
    %v522 = vunpack.c.l.b16 %v482
    %v523 = vunpack.c.l.b16 %v483
    %v524 = vunpack.c.l.b16 %v484
    %v525 = vunpack.c.l.b16 %v485
    %v526 = vunpack.c.l.b16 %v486
    %v527 = vunpack.c.l.b16 %v487
    %v528 = vunpack.c.l.b16 %v488
    %v529 = vunpack.c.l.b16 %v489
    %v530 = vunpack.c.l.b16 %v490
    %v531 = vunpack.c.l.b16 %v491
    %v532 = vunpack.c.l.b16 %v492
    %v533 = vpack.c.b16 %v518, %v517
    %v534 = vpack.c.b16 %v520, %v519
    %v535 = vpack.c.b16 %v522, %v521
    %v536 = vpack.c.b16 %v524, %v523
    %v537 = vpack.c.b16 %v526, %v525
    %v538 = vpack.c.b16 %v528, %v527
    %v539 = vpack.c.b16 %v530, %v529
    %v540 = vpack.c.b16 %v532, %v531
    %549 = vmatprep.subr.bf16.mxu0 0
    %550 = vmatpush1.bf16.msra.mxu0 %v533
    %551 = vmatprep.subr.bf16.mxu0 0
    %552 = vmatpush1.bf16.msra.mxu0 %v534
    %553 = vmatprep.subr.bf16.mxu0 0
    %554 = vmatpush1.bf16.msra.mxu0 %v535
    %555 = vmatprep.subr.bf16.mxu0 0
    %556 = vmatpush1.bf16.msra.mxu0 %v536
    %557 = vmatprep.subr.bf16.mxu0 0
    %558 = vmatpush1.bf16.msra.mxu0 %v537
    %559 = vmatprep.subr.bf16.mxu0 0
    %560 = vmatpush1.bf16.msra.mxu0 %v538
    %561 = vmatprep.subr.bf16.mxu0 0
    %562 = vmatpush1.bf16.msra.mxu0 %v539
    %563 = vmatprep.subr.bf16.mxu0 0
    %564 = vmatpush1.bf16.msra.mxu0 %v540
    %565 = vmatprep.subr.bf16.mxu0 0
    %566 = vmatpush1.bf16.msra.mxu0 0
    %567 = vmatprep.subr.bf16.mxu0 0
    %568 = vmatpush1.bf16.msra.mxu0 0
    %569 = vmatprep.subr.bf16.mxu0 0
    %570 = vmatpush1.bf16.msra.mxu0 0
    %571 = vmatprep.subr.bf16.mxu0 0
    %572 = vmatpush1.bf16.msra.mxu0 0
    %573 = vmatprep.subr.bf16.mxu0 0
    %574 = vmatpush1.bf16.msra.mxu0 0
    %575 = vmatprep.subr.bf16.mxu0 0
    %576 = vmatpush1.bf16.msra.mxu0 0
    %577 = vmatprep.subr.bf16.mxu0 0
    %578 = vmatpush1.bf16.msra.mxu0 0
    %579 = vmatprep.subr.bf16.mxu0 0
    %580 = vmatpush1.bf16.msra.mxu0 0
    %581 = vmatprep.mubr.bf16.mxu0 0
    %582 = vmatmul.mubr.bf16.gmra.mrb[0].mxu0 %v475
    %v583 = vpop.f32.mrb[0].mxu0
    %v584 = vadd.f32 %v499, %v583
    %v585 = vpop.f32.mrb[0].mxu0
    %v586 = vpop.f32.mrb[0].mxu0
    %v587 = vadd.f32 %v499, %v586
    %v588 = vpop.f32.mrb[0].mxu0
    %589 = vdwg.mxu0
    %v590 = vmax.f32 %v584, 0.0
    %v591 = vmax.f32 %v587, 0.0
    %v592 = vpack.c.bf16 %v591, %v590
    %s593 = scalar_lea.vmem %s3, 192
    %v594 = vld [vmem:[%s593] sm:$0xf]
    %v595 = vld [vmem:[%s593 + $0x4] sm:$0xf]
    %v596 = vld [vmem:[%s593 + $0x8] sm:$0xf]
    %v597 = vld [vmem:[%s593 + $0xc] sm:$0xf]
    %v598 = vld [vmem:[%s593 + $0x10] sm:$0xf]
    %v599 = vld [vmem:[%s593 + $0x14] sm:$0xf]
    %v600 = vld [vmem:[%s593 + $0x18] sm:$0xf]
    %v601 = vld [vmem:[%s593 + $0x1c] sm:$0xf]
    %v602 = vld [vmem:[%s593 + $0x20] sm:$0xf]
    %v603 = vld [vmem:[%s593 + $0x24] sm:$0xf]
    %v604 = vld [vmem:[%s593 + $0x28] sm:$0xf]
    %v605 = vld [vmem:[%s593 + $0x2c] sm:$0xf]
    %v606 = vld [vmem:[%s593 + $0x30] sm:$0xf]
    %v607 = vld [vmem:[%s593 + $0x34] sm:$0xf]
    %v608 = vld [vmem:[%s593 + $0x38] sm:$0xf]
    %v609 = vld [vmem:[%s593 + $0x3c] sm:$0xf]
    %s610 = scalar_lea.vmem [#allocation4], 8
    %v611 = vld [vmem:[%s610] sm:$0x1]
    %v613 = vlaneseq
    %v614 = vshrl.u32 %v613, 7
    %v615 = vsub.s32 0, %v614
    %v616 = vrot.slane %v611, %v615
    %v634 = vunpack.c.l.b16 %v594
    %v635 = vunpack.c.l.b16 %v595
    %v636 = vunpack.c.l.b16 %v596
    %v637 = vunpack.c.l.b16 %v597
    %v638 = vunpack.c.l.b16 %v598
    %v639 = vunpack.c.l.b16 %v599
    %v640 = vunpack.c.l.b16 %v600
    %v641 = vunpack.c.l.b16 %v601
    %v642 = vunpack.c.l.b16 %v602
    %v643 = vunpack.c.l.b16 %v603
    %v644 = vunpack.c.l.b16 %v604
    %v645 = vunpack.c.l.b16 %v605
    %v646 = vunpack.c.l.b16 %v606
    %v647 = vunpack.c.l.b16 %v607
    %v648 = vunpack.c.l.b16 %v608
    %v649 = vunpack.c.l.b16 %v609
    %v650 = vpack.c.b16 %v635, %v634
    %v651 = vpack.c.b16 %v637, %v636
    %v652 = vpack.c.b16 %v639, %v638
    %v653 = vpack.c.b16 %v641, %v640
    %v654 = vpack.c.b16 %v643, %v642
    %v655 = vpack.c.b16 %v645, %v644
    %v656 = vpack.c.b16 %v647, %v646
    %v657 = vpack.c.b16 %v649, %v648
    %666 = vmatprep.subr.bf16.mxu0 0
    %667 = vmatpush1.bf16.msra.mxu0 %v650
    %668 = vmatprep.subr.bf16.mxu0 0
    %669 = vmatpush1.bf16.msra.mxu0 %v651
    %670 = vmatprep.subr.bf16.mxu0 0
    %671 = vmatpush1.bf16.msra.mxu0 %v652
    %672 = vmatprep.subr.bf16.mxu0 0
    %673 = vmatpush1.bf16.msra.mxu0 %v653
    %674 = vmatprep.subr.bf16.mxu0 0
    %675 = vmatpush1.bf16.msra.mxu0 %v654
    %676 = vmatprep.subr.bf16.mxu0 0
    %677 = vmatpush1.bf16.msra.mxu0 %v655
    %678 = vmatprep.subr.bf16.mxu0 0
    %679 = vmatpush1.bf16.msra.mxu0 %v656
    %680 = vmatprep.subr.bf16.mxu0 0
    %681 = vmatpush1.bf16.msra.mxu0 %v657
    %682 = vmatprep.subr.bf16.mxu0 0
    %683 = vmatpush1.bf16.msra.mxu0 0
    %684 = vmatprep.subr.bf16.mxu0 0
    %685 = vmatpush1.bf16.msra.mxu0 0
    %686 = vmatprep.subr.bf16.mxu0 0
    %687 = vmatpush1.bf16.msra.mxu0 0
    %688 = vmatprep.subr.bf16.mxu0 0
    %689 = vmatpush1.bf16.msra.mxu0 0
    %690 = vmatprep.subr.bf16.mxu0 0
    %691 = vmatpush1.bf16.msra.mxu0 0
    %692 = vmatprep.subr.bf16.mxu0 0
    %693 = vmatpush1.bf16.msra.mxu0 0
    %694 = vmatprep.subr.bf16.mxu0 0
    %695 = vmatpush1.bf16.msra.mxu0 0
    %696 = vmatprep.subr.bf16.mxu0 0
    %697 = vmatpush1.bf16.msra.mxu0 0
    %698 = vmatprep.mubr.bf16.mxu0 0
    %699 = vmatmul.mubr.bf16.gmra.mrb[0].mxu0 %v592
    %v700 = vpop.f32.mrb[0].mxu0
    %v701 = vadd.f32 %v616, %v700
    %v702 = vpop.f32.mrb[0].mxu0
    %v703 = vpop.f32.mrb[0].mxu0
    %v704 = vadd.f32 %v616, %v703
    %v705 = vpop.f32.mrb[0].mxu0
    %706 = vdwg.mxu0
    %v707 = vmax.f32 %v701, 0.0
    %v708 = vmax.f32 %v704, 0.0
    %v709 = vpack.c.bf16 %v708, %v707
    %s710 = scalar_lea.vmem %s3, 256
    %v711 = vld [vmem:[%s710] sm:$0xf]
    %v712 = vld [vmem:[%s710 + $0x4] sm:$0xf]
    %v713 = vld [vmem:[%s710 + $0x8] sm:$0xf]
    %v714 = vld [vmem:[%s710 + $0xc] sm:$0xf]
    %v715 = vld [vmem:[%s710 + $0x10] sm:$0xf]
    %v716 = vld [vmem:[%s710 + $0x14] sm:$0xf]
    %v717 = vld [vmem:[%s710 + $0x18] sm:$0xf]
    %v718 = vld [vmem:[%s710 + $0x1c] sm:$0xf]
    %v719 = vld [vmem:[%s710 + $0x20] sm:$0xf]
    %v720 = vld [vmem:[%s710 + $0x24] sm:$0xf]
    %v721 = vld [vmem:[%s710 + $0x28] sm:$0xf]
    %v722 = vld [vmem:[%s710 + $0x2c] sm:$0xf]
    %v723 = vld [vmem:[%s710 + $0x30] sm:$0xf]
    %v724 = vld [vmem:[%s710 + $0x34] sm:$0xf]
    %v725 = vld [vmem:[%s710 + $0x38] sm:$0xf]
    %v726 = vld [vmem:[%s710 + $0x3c] sm:$0xf]
    %s727 = scalar_lea.vmem [#allocation4], 10
    %v728 = vld [vmem:[%s727] sm:$0x1]
    %v730 = vlaneseq
    %v731 = vshrl.u32 %v730, 7
    %v732 = vsub.s32 0, %v731
    %v733 = vrot.slane %v728, %v732
    %v751 = vunpack.c.l.b16 %v711
    %v752 = vunpack.c.l.b16 %v712
    %v753 = vunpack.c.l.b16 %v713
    %v754 = vunpack.c.l.b16 %v714
    %v755 = vunpack.c.l.b16 %v715
    %v756 = vunpack.c.l.b16 %v716
    %v757 = vunpack.c.l.b16 %v717
    %v758 = vunpack.c.l.b16 %v718
    %v759 = vunpack.c.l.b16 %v719
    %v760 = vunpack.c.l.b16 %v720
    %v761 = vunpack.c.l.b16 %v721
    %v762 = vunpack.c.l.b16 %v722
    %v763 = vunpack.c.l.b16 %v723
    %v764 = vunpack.c.l.b16 %v724
    %v765 = vunpack.c.l.b16 %v725
    %v766 = vunpack.c.l.b16 %v726
    %v767 = vpack.c.b16 %v752, %v751
    %v768 = vpack.c.b16 %v754, %v753
    %v769 = vpack.c.b16 %v756, %v755
    %v770 = vpack.c.b16 %v758, %v757
    %v771 = vpack.c.b16 %v760, %v759
    %v772 = vpack.c.b16 %v762, %v761
    %v773 = vpack.c.b16 %v764, %v763
    %v774 = vpack.c.b16 %v766, %v765
    %783 = vmatprep.subr.bf16.mxu0 0
    %784 = vmatpush1.bf16.msra.mxu0 %v767
    %785 = vmatprep.subr.bf16.mxu0 0
    %786 = vmatpush1.bf16.msra.mxu0 %v768
    %787 = vmatprep.subr.bf16.mxu0 0
    %788 = vmatpush1.bf16.msra.mxu0 %v769
    %789 = vmatprep.subr.bf16.mxu0 0
    %790 = vmatpush1.bf16.msra.mxu0 %v770
    %791 = vmatprep.subr.bf16.mxu0 0
    %792 = vmatpush1.bf16.msra.mxu0 %v771
    %793 = vmatprep.subr.bf16.mxu0 0
    %794 = vmatpush1.bf16.msra.mxu0 %v772
    %795 = vmatprep.subr.bf16.mxu0 0
    %796 = vmatpush1.bf16.msra.mxu0 %v773
    %797 = vmatprep.subr.bf16.mxu0 0
    %798 = vmatpush1.bf16.msra.mxu0 %v774
    %799 = vmatprep.subr.bf16.mxu0 0
    %800 = vmatpush1.bf16.msra.mxu0 0
    %801 = vmatprep.subr.bf16.mxu0 0
    %802 = vmatpush1.bf16.msra.mxu0 0
    %803 = vmatprep.subr.bf16.mxu0 0
    %804 = vmatpush1.bf16.msra.mxu0 0
    %805 = vmatprep.subr.bf16.mxu0 0
    %806 = vmatpush1.bf16.msra.mxu0 0
    %807 = vmatprep.subr.bf16.mxu0 0
    %808 = vmatpush1.bf16.msra.mxu0 0
    %809 = vmatprep.subr.bf16.mxu0 0
    %810 = vmatpush1.bf16.msra.mxu0 0
    %811 = vmatprep.subr.bf16.mxu0 0
    %812 = vmatpush1.bf16.msra.mxu0 0
    %813 = vmatprep.subr.bf16.mxu0 0
    %814 = vmatpush1.bf16.msra.mxu0 0
    %815 = vmatprep.mubr.bf16.mxu0 0
    %816 = vmatmul.mubr.bf16.gmra.mrb[0].mxu0 %v709
    %v817 = vpop.f32.mrb[0].mxu0
    %v818 = vadd.f32 %v733, %v817
    %v819 = vpop.f32.mrb[0].mxu0
    %v820 = vpop.f32.mrb[0].mxu0
    %v821 = vadd.f32 %v733, %v820
    %v822 = vpop.f32.mrb[0].mxu0
    %823 = vdwg.mxu0
    %v824 = vpack.c.bf16 %v821, %v818
    %s825 = scalar_lea.vmem %s3, 320
    %v826 = vld [vmem:[%s825] sm:$0xf]
    %v827 = vld [vmem:[%s825 + $0x4] sm:$0xf]
    %v828 = vld [vmem:[%s825 + $0x8] sm:$0xf]
    %v829 = vld [vmem:[%s825 + $0xc] sm:$0xf]
    %v830 = vld [vmem:[%s825 + $0x10] sm:$0xf]
    %v831 = vld [vmem:[%s825 + $0x14] sm:$0xf]
    %v832 = vld [vmem:[%s825 + $0x18] sm:$0xf]
    %v833 = vld [vmem:[%s825 + $0x1c] sm:$0xf]
    %v834 = vld [vmem:[%s825 + $0x20] sm:$0xf]
    %v835 = vld [vmem:[%s825 + $0x24] sm:$0xf]
    %v836 = vld [vmem:[%s825 + $0x28] sm:$0xf]
    %v837 = vld [vmem:[%s825 + $0x2c] sm:$0xf]
    %v838 = vld [vmem:[%s825 + $0x30] sm:$0xf]
    %v839 = vld [vmem:[%s825 + $0x34] sm:$0xf]
    %v840 = vld [vmem:[%s825 + $0x38] sm:$0xf]
    %v841 = vld [vmem:[%s825 + $0x3c] sm:$0xf]
    %v842 = vld [vmem:[%s1] sm:$0xff]
    %v843 = vld [vmem:[%s1 + $0x8] sm:$0xff]
    %v860 = vunpack.c.l.b16 %v826
    %v861 = vunpack.c.l.b16 %v827
    %v862 = vunpack.c.l.b16 %v828
    %v863 = vunpack.c.l.b16 %v829
    %v864 = vunpack.c.l.b16 %v830
    %v865 = vunpack.c.l.b16 %v831
    %v866 = vunpack.c.l.b16 %v832
    %v867 = vunpack.c.l.b16 %v833
    %v868 = vunpack.c.l.b16 %v834
    %v869 = vunpack.c.l.b16 %v835
    %v870 = vunpack.c.l.b16 %v836
    %v871 = vunpack.c.l.b16 %v837
    %v872 = vunpack.c.l.b16 %v838
    %v873 = vunpack.c.l.b16 %v839
    %v874 = vunpack.c.l.b16 %v840
    %v875 = vunpack.c.l.b16 %v841
    %v876 = vpack.c.b16 %v861, %v860
    %v877 = vpack.c.b16 %v863, %v862
    %v878 = vpack.c.b16 %v865, %v864
    %v879 = vpack.c.b16 %v867, %v866
    %v880 = vpack.c.b16 %v869, %v868
    %v881 = vpack.c.b16 %v871, %v870
    %v882 = vpack.c.b16 %v873, %v872
    %v883 = vpack.c.b16 %v875, %v874
    %892 = vmatprep.subr.bf16.mxu0 0
    %893 = vmatpush1.bf16.msra.mxu0 %v876
    %894 = vmatprep.subr.bf16.mxu0 0
    %895 = vmatpush1.bf16.msra.mxu0 %v877
    %896 = vmatprep.subr.bf16.mxu0 0
    %897 = vmatpush1.bf16.msra.mxu0 %v878
    %898 = vmatprep.subr.bf16.mxu0 0
    %899 = vmatpush1.bf16.msra.mxu0 %v879
    %900 = vmatprep.subr.bf16.mxu0 0
    %901 = vmatpush1.bf16.msra.mxu0 %v880
    %902 = vmatprep.subr.bf16.mxu0 0
    %903 = vmatpush1.bf16.msra.mxu0 %v881
    %904 = vmatprep.subr.bf16.mxu0 0
    %905 = vmatpush1.bf16.msra.mxu0 %v882
    %906 = vmatprep.subr.bf16.mxu0 0
    %907 = vmatpush1.bf16.msra.mxu0 %v883
    %908 = vmatprep.subr.bf16.mxu0 0
    %909 = vmatpush1.bf16.msra.mxu0 0
    %910 = vmatprep.subr.bf16.mxu0 0
    %911 = vmatpush1.bf16.msra.mxu0 0
    %912 = vmatprep.subr.bf16.mxu0 0
    %913 = vmatpush1.bf16.msra.mxu0 0
    %914 = vmatprep.subr.bf16.mxu0 0
    %915 = vmatpush1.bf16.msra.mxu0 0
    %916 = vmatprep.subr.bf16.mxu0 0
    %917 = vmatpush1.bf16.msra.mxu0 0
    %918 = vmatprep.subr.bf16.mxu0 0
    %919 = vmatpush1.bf16.msra.mxu0 0
    %920 = vmatprep.subr.bf16.mxu0 0
    %921 = vmatpush1.bf16.msra.mxu0 0
    %922 = vmatprep.subr.bf16.mxu0 0
    %923 = vmatpush1.bf16.msra.mxu0 0
    %924 = vmatprep.mubr.bf16.mxu0 0
    %925 = vmatmul.mubr.bf16.gmra.mrb[0].mxu0 %v824
    %v926 = vpop.f32.mrb[0].mxu0
    %v927 = vadd.f32 %v842, %v926
    %v928 = vpop.f32.mrb[0].mxu0
    %v929 = vpop.f32.mrb[0].mxu0
    %v930 = vadd.f32 %v843, %v929
    %v931 = vpop.f32.mrb[0].mxu0
    %932 = vdwg.mxu0
    %s933 = scalar_lea.vmem [#allocation4], 12
    %v934 = vld [vmem:[%s933] sm:$0x1]
    %v936 = vlaneseq
    %v937 = vshrl.u32 %v936, 7
    %v938 = vsub.s32 0, %v937
    %v939 = vrot.slane %v934, %v938
    %v941 = vadd.f32 %v927, %v939
    %v942 = vadd.f32 %v930, %v939
    %v943 = vmax.f32 %v941, 0.0
    %v944 = vmax.f32 %v942, 0.0
    %v945 = vpack.c.bf16 %v944, %v943
    %s946 = scalar_lea.vmem %s3, 384
    %v947 = vld [vmem:[%s946] sm:$0xf]
    %v948 = vld [vmem:[%s946 + $0x4] sm:$0xf]
    %v949 = vld [vmem:[%s946 + $0x8] sm:$0xf]
    %v950 = vld [vmem:[%s946 + $0xc] sm:$0xf]
    %v951 = vld [vmem:[%s946 + $0x10] sm:$0xf]
    %v952 = vld [vmem:[%s946 + $0x14] sm:$0xf]
    %v953 = vld [vmem:[%s946 + $0x18] sm:$0xf]
    %v954 = vld [vmem:[%s946 + $0x1c] sm:$0xf]
    %v955 = vld [vmem:[%s946 + $0x20] sm:$0xf]
    %v956 = vld [vmem:[%s946 + $0x24] sm:$0xf]
    %v957 = vld [vmem:[%s946 + $0x28] sm:$0xf]
    %v958 = vld [vmem:[%s946 + $0x2c] sm:$0xf]
    %v959 = vld [vmem:[%s946 + $0x30] sm:$0xf]
    %v960 = vld [vmem:[%s946 + $0x34] sm:$0xf]
    %v961 = vld [vmem:[%s946 + $0x38] sm:$0xf]
    %v962 = vld [vmem:[%s946 + $0x3c] sm:$0xf]
    %s963 = scalar_lea.vmem [#allocation4], 14
    %v964 = vld [vmem:[%s963] sm:$0x1]
    %v966 = vlaneseq
    %v967 = vshrl.u32 %v966, 7
    %v968 = vsub.s32 0, %v967
    %v969 = vrot.slane %v964, %v968
    %v987 = vunpack.c.l.b16 %v947
    %v988 = vunpack.c.l.b16 %v948
    %v989 = vunpack.c.l.b16 %v949
    %v990 = vunpack.c.l.b16 %v950
    %v991 = vunpack.c.l.b16 %v951
    %v992 = vunpack.c.l.b16 %v952
    %v993 = vunpack.c.l.b16 %v953
    %v994 = vunpack.c.l.b16 %v954
    %v995 = vunpack.c.l.b16 %v955
    %v996 = vunpack.c.l.b16 %v956
    %v997 = vunpack.c.l.b16 %v957
    %v998 = vunpack.c.l.b16 %v958
    %v999 = vunpack.c.l.b16 %v959
    %v1000 = vunpack.c.l.b16 %v960
    %v1001 = vunpack.c.l.b16 %v961
    %v1002 = vunpack.c.l.b16 %v962
    %v1003 = vpack.c.b16 %v988, %v987
    %v1004 = vpack.c.b16 %v990, %v989
    %v1005 = vpack.c.b16 %v992, %v991
    %v1006 = vpack.c.b16 %v994, %v993
    %v1007 = vpack.c.b16 %v996, %v995
    %v1008 = vpack.c.b16 %v998, %v997
    %v1009 = vpack.c.b16 %v1000, %v999
    %v1010 = vpack.c.b16 %v1002, %v1001
    %1019 = vmatprep.subr.bf16.mxu0 0
    %1020 = vmatpush1.bf16.msra.mxu0 %v1003
    %1021 = vmatprep.subr.bf16.mxu0 0
    %1022 = vmatpush1.bf16.msra.mxu0 %v1004
    %1023 = vmatprep.subr.bf16.mxu0 0
    %1024 = vmatpush1.bf16.msra.mxu0 %v1005
    %1025 = vmatprep.subr.bf16.mxu0 0
    %1026 = vmatpush1.bf16.msra.mxu0 %v1006
    %1027 = vmatprep.subr.bf16.mxu0 0
    %1028 = vmatpush1.bf16.msra.mxu0 %v1007
    %1029 = vmatprep.subr.bf16.mxu0 0
    %1030 = vmatpush1.bf16.msra.mxu0 %v1008
    %1031 = vmatprep.subr.bf16.mxu0 0
    %1032 = vmatpush1.bf16.msra.mxu0 %v1009
    %1033 = vmatprep.subr.bf16.mxu0 0
    %1034 = vmatpush1.bf16.msra.mxu0 %v1010
    %1035 = vmatprep.subr.bf16.mxu0 0
    %1036 = vmatpush1.bf16.msra.mxu0 0
    %1037 = vmatprep.subr.bf16.mxu0 0
    %1038 = vmatpush1.bf16.msra.mxu0 0
    %1039 = vmatprep.subr.bf16.mxu0 0
    %1040 = vmatpush1.bf16.msra.mxu0 0
    %1041 = vmatprep.subr.bf16.mxu0 0
    %1042 = vmatpush1.bf16.msra.mxu0 0
    %1043 = vmatprep.subr.bf16.mxu0 0
    %1044 = vmatpush1.bf16.msra.mxu0 0
    %1045 = vmatprep.subr.bf16.mxu0 0
    %1046 = vmatpush1.bf16.msra.mxu0 0
    %1047 = vmatprep.subr.bf16.mxu0 0
    %1048 = vmatpush1.bf16.msra.mxu0 0
    %1049 = vmatprep.subr.bf16.mxu0 0
    %1050 = vmatpush1.bf16.msra.mxu0 0
    %1051 = vmatprep.mubr.bf16.mxu0 0
    %1052 = vmatmul.mubr.bf16.gmra.mrb[0].mxu0 %v945
    %v1053 = vpop.f32.mrb[0].mxu0
    %v1054 = vadd.f32 %v969, %v1053
    %v1055 = vpop.f32.mrb[0].mxu0
    %v1056 = vpop.f32.mrb[0].mxu0
    %v1057 = vadd.f32 %v969, %v1056
    %v1058 = vpop.f32.mrb[0].mxu0
    %1059 = vdwg.mxu0
    %v1060 = vmax.f32 %v1054, 0.0
    %v1061 = vmax.f32 %v1057, 0.0
    %v1062 = vpack.c.bf16 %v1061, %v1060
    %v1063 = vld [vmem:[#allocation2] sm:$0xff]
    %v1064 = vld [vmem:[#allocation2 + $0x8] sm:$0xff]
    %v1065 = vld [vmem:[#allocation2 + $0x10] sm:$0xff]
    %v1066 = vld [vmem:[#allocation2 + $0x18] sm:$0xff]
    %v1067 = vld [vmem:[#allocation2 + $0x20] sm:$0xff]
    %v1068 = vld [vmem:[#allocation2 + $0x28] sm:$0xff]
    %v1069 = vld [vmem:[#allocation2 + $0x30] sm:$0xff]
    %v1070 = vld [vmem:[#allocation2 + $0x38] sm:$0xff]
    %v1071 = vld [vmem:[#allocation2 + $0x40] sm:$0xff]
    %v1072 = vld [vmem:[#allocation2 + $0x48] sm:$0xff]
    %v1073 = vld [vmem:[#allocation2 + $0x50] sm:$0xff]
    %v1074 = vld [vmem:[#allocation2 + $0x58] sm:$0xff]
    %v1075 = vld [vmem:[#allocation2 + $0x60] sm:$0xff]
    %v1076 = vld [vmem:[#allocation2 + $0x68] sm:$0xff]
    %v1077 = vld [vmem:[#allocation2 + $0x70] sm:$0xff]
    %v1078 = vld [vmem:[#allocation2 + $0x78] sm:$0xff]
    %s1079 = scalar_lea.vmem [#allocation4], 16
    %v1080 = vld [vmem:[%s1079] sm:$0x3]
    %v1082 = vlaneseq
    %v1083 = vshrl.u32 %v1082, 7
    %v1084 = vsub.s32 0, %v1083
    %v1085 = vrot.slane %v1080, %v1084
    %v1086 = vlaneseq
    %v1087 = vshrl.u32 %v1086, 7
    %v1088 = vsub.s32 1, %v1087
    %v1089 = vrot.slane %v1080, %v1088
    %v1108 = vunpack.c.l.b16 %v1063
    %v1109 = vunpack.c.h.b16 %v1063
    %v1110 = vunpack.c.l.b16 %v1064
    %v1111 = vunpack.c.h.b16 %v1064
    %v1112 = vunpack.c.l.b16 %v1065
    %v1113 = vunpack.c.h.b16 %v1065
    %v1114 = vunpack.c.l.b16 %v1066
    %v1115 = vunpack.c.h.b16 %v1066
    %v1116 = vunpack.c.l.b16 %v1067
    %v1117 = vunpack.c.h.b16 %v1067
    %v1118 = vunpack.c.l.b16 %v1068
    %v1119 = vunpack.c.h.b16 %v1068
    %v1120 = vunpack.c.l.b16 %v1069
    %v1121 = vunpack.c.h.b16 %v1069
    %v1122 = vunpack.c.l.b16 %v1070
    %v1123 = vunpack.c.h.b16 %v1070
    %v1124 = vunpack.c.l.b16 %v1071
    %v1125 = vunpack.c.h.b16 %v1071
    %v1126 = vunpack.c.l.b16 %v1072
    %v1127 = vunpack.c.h.b16 %v1072
    %v1128 = vunpack.c.l.b16 %v1073
    %v1129 = vunpack.c.h.b16 %v1073
    %v1130 = vunpack.c.l.b16 %v1074
    %v1131 = vunpack.c.h.b16 %v1074
    %v1132 = vunpack.c.l.b16 %v1075
    %v1133 = vunpack.c.h.b16 %v1075
    %v1134 = vunpack.c.l.b16 %v1076
    %v1135 = vunpack.c.h.b16 %v1076
    %v1136 = vunpack.c.l.b16 %v1077
    %v1137 = vunpack.c.h.b16 %v1077
    %v1138 = vunpack.c.l.b16 %v1078
    %v1139 = vunpack.c.h.b16 %v1078
    %v1140 = vpack.c.b16 %v1110, %v1108
    %v1141 = vpack.c.b16 %v1111, %v1109
    %v1142 = vpack.c.b16 %v1114, %v1112
    %v1143 = vpack.c.b16 %v1115, %v1113
    %v1144 = vpack.c.b16 %v1118, %v1116
    %v1145 = vpack.c.b16 %v1119, %v1117
    %v1146 = vpack.c.b16 %v1122, %v1120
    %v1147 = vpack.c.b16 %v1123, %v1121
    %v1148 = vpack.c.b16 %v1126, %v1124
    %v1149 = vpack.c.b16 %v1127, %v1125
    %v1150 = vpack.c.b16 %v1130, %v1128
    %v1151 = vpack.c.b16 %v1131, %v1129
    %v1152 = vpack.c.b16 %v1134, %v1132
    %v1153 = vpack.c.b16 %v1135, %v1133
    %v1154 = vpack.c.b16 %v1138, %v1136
    %v1155 = vpack.c.b16 %v1139, %v1137
    %1172 = vmatprep.subr.bf16.mxu0 %v1141
    %1173 = vmatpush1.bf16.msra.mxu0 %v1140
    %1174 = vmatprep.subr.bf16.mxu0 %v1143
    %1175 = vmatpush1.bf16.msra.mxu0 %v1142
    %1176 = vmatprep.subr.bf16.mxu0 %v1145
    %1177 = vmatpush1.bf16.msra.mxu0 %v1144
    %1178 = vmatprep.subr.bf16.mxu0 %v1147
    %1179 = vmatpush1.bf16.msra.mxu0 %v1146
    %1180 = vmatprep.subr.bf16.mxu0 %v1149
    %1181 = vmatpush1.bf16.msra.mxu0 %v1148
    %1182 = vmatprep.subr.bf16.mxu0 %v1151
    %1183 = vmatpush1.bf16.msra.mxu0 %v1150
    %1184 = vmatprep.subr.bf16.mxu0 %v1153
    %1185 = vmatpush1.bf16.msra.mxu0 %v1152
    %1186 = vmatprep.subr.bf16.mxu0 %v1155
    %1187 = vmatpush1.bf16.msra.mxu0 %v1154
    %1188 = vmatprep.subr.bf16.mxu0 0
    %1189 = vmatpush1.bf16.msra.mxu0 0
    %1190 = vmatprep.subr.bf16.mxu0 0
    %1191 = vmatpush1.bf16.msra.mxu0 0
    %1192 = vmatprep.subr.bf16.mxu0 0
    %1193 = vmatpush1.bf16.msra.mxu0 0
    %1194 = vmatprep.subr.bf16.mxu0 0
    %1195 = vmatpush1.bf16.msra.mxu0 0
    %1196 = vmatprep.subr.bf16.mxu0 0
    %1197 = vmatpush1.bf16.msra.mxu0 0
    %1198 = vmatprep.subr.bf16.mxu0 0
    %1199 = vmatpush1.bf16.msra.mxu0 0
    %1200 = vmatprep.subr.bf16.mxu0 0
    %1201 = vmatpush1.bf16.msra.mxu0 0
    %1202 = vmatprep.subr.bf16.mxu0 0
    %1203 = vmatpush1.bf16.msra.mxu0 0
    %1204 = vmatprep.mubr.bf16.mxu0 0
    %1205 = vmatmul.mubr.bf16.gmra.mrb[0].mxu0 %v1062
    %v1206 = vpop.f32.mrb[0].mxu0
    %v1207 = vadd.f32 %v1085, %v1206
    %v1208 = vpop.f32.mrb[0].mxu0
    %v1209 = vadd.f32 %v1089, %v1208
    %v1210 = vpop.f32.mrb[0].mxu0
    %v1211 = vadd.f32 %v1085, %v1210
    %v1212 = vpop.f32.mrb[0].mxu0
    %v1213 = vadd.f32 %v1089, %v1212
    %1214 = vdwg.mxu0
    %1215 = vst [vmem:[%s6] sm:$0xff] %v1207
    %1216 = vst [vmem:[%s6 + $0x8] sm:$0xff] %v1209
    %1217 = vst [vmem:[%s6 + $0x10] sm:$0xff] %v1211
    %1218 = vst [vmem:[%s6 + $0x18] sm:$0xff] %v1213
    // Predicated region
    $region34: #{mask_estimator_forward.1} parent=1 // pred_check
      _
    $region35: #{mask_estimator_forward.1} parent=1 // pred_check_branch
      %1220 = sbr.rel (0) target = $region37
    $region36: #{mask_estimator_forward.1} parent=1 // pred_region
      _
    $region37: #{mask_estimator_forward.1} parent=1 // pred_fallthru
      _
    // Predicated region
    $region38: #{mask_estimator_forward.1} parent=1 // pred_check
      _
    $region39: #{mask_estimator_forward.1} parent=1 // pred_check_branch
      %1222 = sbr.rel (0) target = $region41
    $region40: #{mask_estimator_forward.1} parent=1 // pred_region
      _
    $region41: #{mask_estimator_forward.1} parent=1 // pred_fallthru
      _
    %1223 = vsyncpa [#allocation3], 1
    %1224 = vsyncpa [#allocation5], 1

</llo_original>
